<compile_context>
chip_gen: v6e
topology: v6e:2x2x1
jax: 0.10.0
libtpu: 0.0.40
codegen_flags: <defaults>
</compile_context>

<pallas_src>
import jax
import jax.numpy as jnp
from jax import lax
from jax.experimental import pallas as pl
from jax.experimental.pallas import tpu as pltpu


def _round_up(x, m):
    return ((x + m - 1) // m) * m


def n2g_kernel(ids_ref, fused_ref, bias_ref, out_ref):
    """One batch tile: counts (TB, Vp) -> single MXU matmul -> log_softmax."""
    ids = ids_ref[...]                       # (TB, S) int32
    TB, S = ids.shape
    Vp = fused_ref.shape[0]

    # Hoisted 2D iota over the padded vocab lane dim (never re-materialized).
    iota_v = lax.broadcasted_iota(jnp.int32, (TB, Vp), 1)

    # Bag-of-words counts, fully unrolled over the (small, static) sequence
    # length: peak live data is (TB, Vp) instead of (TB, S, Vp).
    counts = jnp.zeros((TB, Vp), jnp.float32)
    for s in range(S):                       # static unroll, static lane slice
        counts = counts + (ids[:, s:s + 1] == iota_v).astype(jnp.float32)

    # Single fused matmul: fused = (embed_table @ W^T) * (1/S), so
    # counts @ fused == mean(embed[ids]) @ W^T.  Padded class lanes carry a
    # -1e30 bias so the softmax normalization ignores them exactly.
    logits = jnp.dot(counts, fused_ref[...],
                     preferred_element_type=jnp.float32) + bias_ref[...]

    # log_softmax along the class (lane) dim, stably max-shifted.
    m = jnp.max(logits, axis=1, keepdims=True)
    shifted = logits - m
    lse = jnp.log(jnp.sum(jnp.exp(shifted), axis=1, keepdims=True))
    out_ref[...] = shifted - lse


def n2g_forward(ids, embed_table, fc_weight, fc_bias, *, tile_b=256):
    """ids: (B, S) int; embed_table: (V, E) f32; fc_weight: (C, E); fc_bias: (C,)."""
    B, S = ids.shape
    V, E = embed_table.shape
    C = fc_weight.shape[0]

    # ---- host-side fusion + padding (tiny, one-off ops) -------------------
    fused = (embed_table @ fc_weight.T) * (1.0 / S)          # (V, C)

    Vp = _round_up(V, 128)                # clean MXU contraction dim
    Cp = _round_up(C, 128)                # lane-dense output, unmasked stores
    tile_b = _round_up(min(tile_b, _round_up(B, 8)), 8)      # 8-sublane aligned
    Bp = _round_up(B, tile_b)

    fused_p = jnp.zeros((Vp, Cp), jnp.float32).at[:V, :C].set(fused)
    bias_p = jnp.full((1, Cp), -1e30, jnp.float32).at[0, :C].set(
        fc_bias.astype(jnp.float32))
    ids_p = jnp.zeros((Bp, S), jnp.int32).at[:B, :].set(ids.astype(jnp.int32))

    grid = (Bp // tile_b,)

    out = pl.pallas_call(
        n2g_kernel,
        out_shape=jax.ShapeDtypeStruct((Bp, Cp), jnp.float32),
        grid=grid,
        in_specs=[
            pl.BlockSpec((tile_b, S), lambda i: (i, 0)),      # ids tile
            pl.BlockSpec((Vp, Cp), lambda i: (0, 0)),         # resident fused W
            pl.BlockSpec((1, Cp), lambda i: (0, 0)),          # resident bias
        ],
        out_specs=pl.BlockSpec((tile_b, Cp), lambda i: (i, 0)),
        compiler_params=pltpu.CompilerParams(
            dimension_semantics=("parallel",),                # megacore on v7x
            vmem_limit_bytes=32 << 20,                        # safe on v5e/v6e/v7x
        ),
        cost_estimate=pl.CostEstimate(
            flops=2 * Bp * Vp * Cp + Bp * S * Vp,
            transcendentals=Bp * Cp,
            bytes_accessed=4 * (Bp * S + Vp * Cp + Bp * Cp),
        ),
    )(ids_p, fused_p, bias_p)

    return out[:B, :C]


if __name__ == "__main__":
    # Small deterministic configuration consistent with the module:
    # vocab of 40 symbols (embedding has 40 + 1 rows), embed_size=32,
    # class_num=2 (male/female), batch=4, sequence length=8.
    vocab_len = 40
    V = vocab_len + 1
    E = 32
    C = 2
    B, S = 4, 8

    key = jax.random.PRNGKey(0)
    k_ids, k_emb, k_w, k_b = jax.random.split(key, 4)

    ids = jax.random.randint(k_ids, (B, S), 0, V, dtype=jnp.int32)
    embed_table = jax.random.normal(k_emb, (V, E), dtype=jnp.float32)
    fc_weight = jax.random.normal(k_w, (C, E), dtype=jnp.float32) * 0.1
    fc_bias = jax.random.normal(k_b, (C,), dtype=jnp.float32) * 0.1

    out = n2g_forward(ids, embed_table, fc_weight, fc_bias)
    out = jax.block_until_ready(out)

    # Pure-JAX reference (same math as the PyTorch forward).
    ref_x = jnp.mean(embed_table[ids], axis=1)                # (B, E)
    ref_logits = ref_x @ fc_weight.T + fc_bias                # (B, C)
    ref = jax.nn.log_softmax(ref_logits, axis=1)
    assert jnp.allclose(out, ref, atol=1e-4, rtol=1e-4), "mismatch vs reference"

    print("KERNEL_OK")
</pallas_src>

<mosaic_0001>
module attributes {stable_mosaic.version = 11 : i64} {
  func.func @n2g_kernel(%arg0: i32, %arg1: memref<8x8xi32, #tpu.memory_space<vmem>>, %arg2: memref<128x128xf32, #tpu.memory_space<vmem>>, %arg3: memref<1x128xf32, #tpu.memory_space<vmem>>, %arg4: memref<8x128xf32, #tpu.memory_space<vmem>>) attributes {dimension_semantics = [#tpu.dimension_semantics<parallel>], iteration_bounds = array<i64: 1>, scalar_prefetch = 0 : i64, scratch_operands = 0 : i64, tpu.core_type = #tpu.core_type<tc>, window_params = [{transform_indices = @transform_0, window_bounds = array<i64: 8, 8>}, {pipeline_mode = #tpu.pipeline_mode<synchronous>, transform_indices = @transform_1, window_bounds = array<i64: 128, 128>}, {pipeline_mode = #tpu.pipeline_mode<synchronous>, transform_indices = @transform_2, window_bounds = array<i64: 1, 128>}, {transform_indices = @transform_3, window_bounds = array<i64: 8, 128>}]} {
    %c0 = arith.constant 0 : index
    %c0_0 = arith.constant 0 : index
    %0 = vector.load %arg1[%c0, %c0_0] : memref<8x8xi32, #tpu.memory_space<vmem>>, vector<8x8xi32>
    %1 = tpu.iota {dimensions = array<i32: 1>} : vector<8x128xi32>
    %cst = arith.constant 0.000000e+00 : f32
    %2 = vector.broadcast %cst : f32 to vector<8x128xf32>
    %3 = vector.extract_strided_slice %0 {offsets = [0, 0], sizes = [8, 1], strides = [1, 1]} : vector<8x8xi32> to vector<8x1xi32>
    %4 = vector.broadcast %3 : vector<8x1xi32> to vector<8x128xi32>
    %5 = arith.cmpi eq, %4, %1 : vector<8x128xi32>
    %6 = arith.extui %5 : vector<8x128xi1> to vector<8x128xi32>
    %7 = arith.sitofp %6 : vector<8x128xi32> to vector<8x128xf32>
    %8 = arith.addf %2, %7 : vector<8x128xf32>
    %9 = vector.extract_strided_slice %0 {offsets = [0, 1], sizes = [8, 1], strides = [1, 1]} : vector<8x8xi32> to vector<8x1xi32>
    %10 = vector.broadcast %9 : vector<8x1xi32> to vector<8x128xi32>
    %11 = arith.cmpi eq, %10, %1 : vector<8x128xi32>
    %12 = arith.extui %11 : vector<8x128xi1> to vector<8x128xi32>
    %13 = arith.sitofp %12 : vector<8x128xi32> to vector<8x128xf32>
    %14 = arith.addf %8, %13 : vector<8x128xf32>
    %15 = vector.extract_strided_slice %0 {offsets = [0, 2], sizes = [8, 1], strides = [1, 1]} : vector<8x8xi32> to vector<8x1xi32>
    %16 = vector.broadcast %15 : vector<8x1xi32> to vector<8x128xi32>
    %17 = arith.cmpi eq, %16, %1 : vector<8x128xi32>
    %18 = arith.extui %17 : vector<8x128xi1> to vector<8x128xi32>
    %19 = arith.sitofp %18 : vector<8x128xi32> to vector<8x128xf32>
    %20 = arith.addf %14, %19 : vector<8x128xf32>
    %21 = vector.extract_strided_slice %0 {offsets = [0, 3], sizes = [8, 1], strides = [1, 1]} : vector<8x8xi32> to vector<8x1xi32>
    %22 = vector.broadcast %21 : vector<8x1xi32> to vector<8x128xi32>
    %23 = arith.cmpi eq, %22, %1 : vector<8x128xi32>
    %24 = arith.extui %23 : vector<8x128xi1> to vector<8x128xi32>
    %25 = arith.sitofp %24 : vector<8x128xi32> to vector<8x128xf32>
    %26 = arith.addf %20, %25 : vector<8x128xf32>
    %27 = vector.extract_strided_slice %0 {offsets = [0, 4], sizes = [8, 1], strides = [1, 1]} : vector<8x8xi32> to vector<8x1xi32>
    %28 = vector.broadcast %27 : vector<8x1xi32> to vector<8x128xi32>
    %29 = arith.cmpi eq, %28, %1 : vector<8x128xi32>
    %30 = arith.extui %29 : vector<8x128xi1> to vector<8x128xi32>
    %31 = arith.sitofp %30 : vector<8x128xi32> to vector<8x128xf32>
    %32 = arith.addf %26, %31 : vector<8x128xf32>
    %33 = vector.extract_strided_slice %0 {offsets = [0, 5], sizes = [8, 1], strides = [1, 1]} : vector<8x8xi32> to vector<8x1xi32>
    %34 = vector.broadcast %33 : vector<8x1xi32> to vector<8x128xi32>
    %35 = arith.cmpi eq, %34, %1 : vector<8x128xi32>
    %36 = arith.extui %35 : vector<8x128xi1> to vector<8x128xi32>
    %37 = arith.sitofp %36 : vector<8x128xi32> to vector<8x128xf32>
    %38 = arith.addf %32, %37 : vector<8x128xf32>
    %39 = vector.extract_strided_slice %0 {offsets = [0, 6], sizes = [8, 1], strides = [1, 1]} : vector<8x8xi32> to vector<8x1xi32>
    %40 = vector.broadcast %39 : vector<8x1xi32> to vector<8x128xi32>
    %41 = arith.cmpi eq, %40, %1 : vector<8x128xi32>
    %42 = arith.extui %41 : vector<8x128xi1> to vector<8x128xi32>
    %43 = arith.sitofp %42 : vector<8x128xi32> to vector<8x128xf32>
    %44 = arith.addf %38, %43 : vector<8x128xf32>
    %45 = vector.extract_strided_slice %0 {offsets = [0, 7], sizes = [8, 1], strides = [1, 1]} : vector<8x8xi32> to vector<8x1xi32>
    %46 = vector.broadcast %45 : vector<8x1xi32> to vector<8x128xi32>
    %47 = arith.cmpi eq, %46, %1 : vector<8x128xi32>
    %48 = arith.extui %47 : vector<8x128xi1> to vector<8x128xi32>
    %49 = arith.sitofp %48 : vector<8x128xi32> to vector<8x128xf32>
    %50 = arith.addf %44, %49 : vector<8x128xf32>
    %c0_1 = arith.constant 0 : index
    %c0_2 = arith.constant 0 : index
    %51 = vector.load %arg2[%c0_1, %c0_2] : memref<128x128xf32, #tpu.memory_space<vmem>>, vector<128x128xf32>
    %cst_3 = arith.constant dense<0.000000e+00> : vector<8x128xf32>
    %52 = tpu.matmul %50, %51, %cst_3 {dimension_numbers = #tpu.dot_dimension_numbers<[1], [0], [0], [1], [0, 0, 1, 1], [], []>} : vector<8x128xf32>, vector<128x128xf32>, vector<8x128xf32> -> vector<8x128xf32>
    %c0_4 = arith.constant 0 : index
    %c0_5 = arith.constant 0 : index
    %53 = vector.load %arg3[%c0_4, %c0_5] : memref<1x128xf32, #tpu.memory_space<vmem>>, vector<1x128xf32>
    %54 = vector.broadcast %53 : vector<1x128xf32> to vector<8x128xf32>
    %55 = arith.addf %52, %54 : vector<8x128xf32>
    %cst_6 = arith.constant dense<0xFF800000> : vector<8xf32>
    %56 = vector.multi_reduction <maximumf>, %55, %cst_6 [1] : vector<8x128xf32> to vector<8xf32>
    %57 = vector.shape_cast %56 : vector<8xf32> to vector<8x1xf32>
    %58 = vector.broadcast %57 : vector<8x1xf32> to vector<8x128xf32>
    %59 = arith.subf %55, %58 : vector<8x128xf32>
    %60 = math.exp %59 : vector<8x128xf32>
    %cst_7 = arith.constant dense<0.000000e+00> : vector<8xf32>
    %61 = vector.multi_reduction <add>, %60, %cst_7 [1] : vector<8x128xf32> to vector<8xf32>
    %62 = vector.shape_cast %61 : vector<8xf32> to vector<8x1xf32>
    %63 = math.log %62 : vector<8x1xf32>
    %64 = vector.broadcast %63 : vector<8x1xf32> to vector<8x128xf32>
    %65 = arith.subf %59, %64 : vector<8x128xf32>
    %c0_8 = arith.constant 0 : index
    %c0_9 = arith.constant 0 : index
    %66 = vector.load %arg4[%c0_8, %c0_9] : memref<8x128xf32, #tpu.memory_space<vmem>>, vector<8x128xf32>
    tpu.vector_store %arg4[%c0_8, %c0_9], %65 {strides = array<i32>} : memref<8x128xf32, #tpu.memory_space<vmem>>, vector<8x128xf32>,
    return
  }
  func.func @transform_0(%arg0: i32) -> (i32, i32) {
    %c0_i32 = arith.constant 0 : i32
    %c0_i32_0 = arith.constant 0 : i32
    return %arg0, %c0_i32 : i32, i32
  }
  func.func @transform_1(%arg0: i32) -> (i32, i32) {
    %c0_i32 = arith.constant 0 : i32
    %c0_i32_0 = arith.constant 0 : i32
    %c0_i32_1 = arith.constant 0 : i32
    return %c0_i32, %c0_i32_0 : i32, i32
  }
  func.func @transform_2(%arg0: i32) -> (i32, i32) {
    %c0_i32 = arith.constant 0 : i32
    %c0_i32_0 = arith.constant 0 : i32
    %c0_i32_1 = arith.constant 0 : i32
    return %c0_i32, %c0_i32_0 : i32, i32
  }
  func.func @transform_3(%arg0: i32) -> (i32, i32) {
    %c0_i32 = arith.constant 0 : i32
    %c0_i32_0 = arith.constant 0 : i32
    return %arg0, %c0_i32 : i32, i32
  }
}

</mosaic_0001>

<llo_original>
// kernel: tpu_custom_call.1
$region0: #{tpu_custom_call.1}
  #allocation0 [shape = 'u32[]', space=smem, size = 0x4, offset = 0x4, fixed_abs, tag = 'smem constant byte address 0x4 - core index']
  #allocation1 [shape = 'u32[144,128]{1,0:T(1,128)}', space=vmem, size = 0x12000, scoped, tag = 'internal scratch']
  %s0 = inlined_call_operand.hbm [shape: s32[8,8], index: 0, kind: input, shape index: {}]
  %s1 = inlined_call_operand.hbm [shape: f32[128,128], index: 1, kind: input, shape index: {}]
  %s2 = inlined_call_operand.vmem [shape: f32[1,128], index: 2, kind: input, shape index: {}]
  %s3 = inlined_call_operand.hbm [shape: f32[8,128], index: 3, kind: output, shape index: {}]
  %s4 = sld [smem:[#allocation0]]
  $region30: #{tpu_custom_call.1} parent=0
    _
  %s6 = ssub.s32 1, %s4
  %s7 = scalar_select 0, %s6, %s4
  $region1: #{tpu_custom_call.1} parent=0
    #allocation2 [shape = 'u8[4096]{0}', space=vmem, size = 0x1000, scoped, tag = 'input window, operand 0, single buffered']
    #allocation3 [shape = 's32[1]{0}', space=sflag, size = 0x4, scoped, tag = 'scoped memory for tpu_custom_call.1']
    #allocation4 [shape = 's32[1]{0}', space=sflag, size = 0x4, scoped, tag = 'scoped memory for tpu_custom_call.1']
    #allocation5 [shape = 'u8[65536]{0}', space=vmem, size = 0x10000, scoped, tag = 'input window, operand 1, single buffered']
    #allocation6 [shape = 's32[1]{0}', space=sflag, size = 0x4, scoped, tag = 'scoped memory for tpu_custom_call.1']
    #allocation7 [shape = 'u8[4096]{0}', space=vmem, size = 0x1000, scoped, tag = 'output window, operand 0, single buffered']
    %8 = vsyncpa [#allocation3], 0
    %9 = vsyncpa [#allocation6], 0
    %10 = vsyncpa [#allocation4], 0
    // Predicated region
    $region2: #{tpu_custom_call.1} parent=1 // pred_check
      _
    $region3: #{tpu_custom_call.1} parent=1 // pred_check_branch
      %12 = sbr.rel (0) target = $region5
    $region4: #{tpu_custom_call.1} parent=1 // pred_region
      %s14 = ssub.s32 128, 128
      %15 = vsyncadd [#allocation3], %s14
      %s17 = sshll.u32 [#allocation2], 4
      %s18 = int_to_ptr.vmem [resolvable:$true] %s17
      %20 = dma.hbm_to_vmem [thread:$0]  %s0, 128, %s18, [#allocation3]
    $region5: #{tpu_custom_call.1} parent=1 // pred_fallthru
      _
    // Predicated region
    $region6: #{tpu_custom_call.1} parent=1 // pred_check
      _
    $region7: #{tpu_custom_call.1} parent=1 // pred_check_branch
      %22 = sbr.rel (0) target = $region9
    $region8: #{tpu_custom_call.1} parent=1 // pred_region
      %s24 = ssub.s32 2048, 2048
      %25 = vsyncadd [#allocation6], %s24
      %s26 = sshll.u32 [#allocation5], 4
      %s27 = int_to_ptr.vmem [resolvable:$true] %s26
      %32 = dma.hbm_to_vmem [thread:$0]  %s1, 2048, %s27, [#allocation6], 128, 128, 8
    $region9: #{tpu_custom_call.1} parent=1 // pred_fallthru
      _
    // Predicated region
    $region10: #{tpu_custom_call.1} parent=1 // pred_check
      _
    $region11: #{tpu_custom_call.1} parent=1 // pred_check_branch
      %34 = sbr.rel (0) target = $region13
    $region12: #{tpu_custom_call.1} parent=1 // pred_region
      _
    $region13: #{tpu_custom_call.1} parent=1 // pred_fallthru
      _
    // Predicated region
    $region14: #{tpu_custom_call.1} parent=1 // pred_check
      _
    $region15: #{tpu_custom_call.1} parent=1 // pred_check_branch
      %36 = sbr.rel (0) target = $region17
    $region16: #{tpu_custom_call.1} parent=1 // pred_region
      %37 = dma.done [#allocation3], 128
    $region17: #{tpu_custom_call.1} parent=1 // pred_fallthru
      _
    // Predicated region
    $region18: #{tpu_custom_call.1} parent=1 // pred_check
      _
    $region19: #{tpu_custom_call.1} parent=1 // pred_check_branch
      %39 = sbr.rel (0) target = $region21
    $region20: #{tpu_custom_call.1} parent=1 // pred_region
      %40 = dma.done [#allocation6], 2048
    $region21: #{tpu_custom_call.1} parent=1 // pred_fallthru
      _
    %v41 = vld [vmem:[#allocation2] sm:$0xff]
    %v42 = vlaneseq
    %v43 = vand.u32 %v42, 127
    %44 = vset.pattern.permute.xlu0 0
    %45 = vperm.xlu0 %44, %v41
    %v46 = vpop.permute.xlu0 %45
    %vm47 = vcmp.eq.s32.totalorder %v46, %v43
    %v48 = vsel %vm47, 1, 0
    %v49 = vcvt.s32.f32 %v48
    %v50 = vadd.f32 %v49, 0.0
    %51 = vset.pattern.permute.xlu0 1
    %52 = vperm.xlu0 %51, %v41
    %v53 = vpop.permute.xlu0 %52
    %vm54 = vcmp.eq.s32.totalorder %v53, %v43
    %v55 = vsel %vm54, 1, 0
    %v56 = vcvt.s32.f32 %v55
    %v57 = vadd.f32 %v50, %v56
    %58 = vset.pattern.permute.xlu0 2
    %59 = vperm.xlu0 %58, %v41
    %v60 = vpop.permute.xlu0 %59
    %vm61 = vcmp.eq.s32.totalorder %v60, %v43
    %v62 = vsel %vm61, 1, 0
    %v63 = vcvt.s32.f32 %v62
    %v64 = vadd.f32 %v57, %v63
    %65 = vset.pattern.permute.xlu0 3
    %66 = vperm.xlu0 %65, %v41
    %v67 = vpop.permute.xlu0 %66
    %vm68 = vcmp.eq.s32.totalorder %v67, %v43
    %v69 = vsel %vm68, 1, 0
    %v70 = vcvt.s32.f32 %v69
    %v71 = vadd.f32 %v64, %v70
    %72 = vset.pattern.permute.xlu0 4
    %73 = vperm.xlu0 %72, %v41
    %v74 = vpop.permute.xlu0 %73
    %vm75 = vcmp.eq.s32.totalorder %v74, %v43
    %v76 = vsel %vm75, 1, 0
    %v77 = vcvt.s32.f32 %v76
    %v78 = vadd.f32 %v71, %v77
    %79 = vset.pattern.permute.xlu0 5
    %80 = vperm.xlu0 %79, %v41
    %v81 = vpop.permute.xlu0 %80
    %vm82 = vcmp.eq.s32.totalorder %v81, %v43
    %v83 = vsel %vm82, 1, 0
    %v84 = vcvt.s32.f32 %v83
    %v85 = vadd.f32 %v78, %v84
    %86 = vset.pattern.permute.xlu0 6
    %87 = vperm.xlu0 %86, %v41
    %v88 = vpop.permute.xlu0 %87
    %vm89 = vcmp.eq.s32.totalorder %v88, %v43
    %v90 = vsel %vm89, 1, 0
    %v91 = vcvt.s32.f32 %v90
    %v92 = vadd.f32 %v85, %v91
    %93 = vset.pattern.permute.xlu0 7
    %94 = vperm.xlu0 %93, %v41
    %v95 = vpop.permute.xlu0 %94
    %vm96 = vcmp.eq.s32.totalorder %v95, %v43
    %v97 = vsel %vm96, 1, 0
    %v98 = vcvt.s32.f32 %v97
    %v99 = vadd.f32 %v92, %v98
    %v100 = vld [vmem:[#allocation5] sm:$0xff]
    %v101 = vld [vmem:[#allocation5 + $0x8] sm:$0xff]
    %v102 = vld [vmem:[#allocation5 + $0x10] sm:$0xff]
    %v103 = vld [vmem:[#allocation5 + $0x18] sm:$0xff]
    %v104 = vld [vmem:[#allocation5 + $0x20] sm:$0xff]
    %v105 = vld [vmem:[#allocation5 + $0x28] sm:$0xff]
    %v106 = vld [vmem:[#allocation5 + $0x30] sm:$0xff]
    %v107 = vld [vmem:[#allocation5 + $0x38] sm:$0xff]
    %v108 = vld [vmem:[#allocation5 + $0x40] sm:$0xff]
    %v109 = vld [vmem:[#allocation5 + $0x48] sm:$0xff]
    %v110 = vld [vmem:[#allocation5 + $0x50] sm:$0xff]
    %v111 = vld [vmem:[#allocation5 + $0x58] sm:$0xff]
    %v112 = vld [vmem:[#allocation5 + $0x60] sm:$0xff]
    %v113 = vld [vmem:[#allocation5 + $0x68] sm:$0xff]
    %v114 = vld [vmem:[#allocation5 + $0x70] sm:$0xff]
    %v115 = vld [vmem:[#allocation5 + $0x78] sm:$0xff]
    %v116 = vld [vmem:[%s2] sm:$0x1]
    %v118 = vlaneseq
    %v119 = vshrl.u32 %v118, 7
    %v120 = vsub.s32 0, %v119
    %v121 = vrot.slane %v116, %v120
    %123 = vmatprep.subr.mxu0 0.0
    %124 = vmatpush1.msra.mxu0 %v115
    %125 = vmatprep.subr.mxu0 0.0
    %126 = vmatpush1.msra.mxu0 %v114
    %127 = vmatprep.subr.mxu0 0.0
    %128 = vmatpush1.msra.mxu0 %v113
    %129 = vmatprep.subr.mxu0 0.0
    %130 = vmatpush1.msra.mxu0 %v112
    %131 = vmatprep.subr.mxu0 0.0
    %132 = vmatpush1.msra.mxu0 %v111
    %133 = vmatprep.subr.mxu0 0.0
    %134 = vmatpush1.msra.mxu0 %v110
    %135 = vmatprep.subr.mxu0 0.0
    %136 = vmatpush1.msra.mxu0 %v109
    %137 = vmatprep.subr.mxu0 0.0
    %138 = vmatpush1.msra.mxu0 %v108
    %139 = vmatprep.subr.mxu0 0.0
    %140 = vmatpush1.msra.mxu0 %v107
    %141 = vmatprep.subr.mxu0 0.0
    %142 = vmatpush1.msra.mxu0 %v106
    %143 = vmatprep.subr.mxu0 0.0
    %144 = vmatpush1.msra.mxu0 %v105
    %145 = vmatprep.subr.mxu0 0.0
    %146 = vmatpush1.msra.mxu0 %v104
    %147 = vmatprep.subr.mxu0 0.0
    %148 = vmatpush1.msra.mxu0 %v103
    %149 = vmatprep.subr.mxu0 0.0
    %150 = vmatpush1.msra.mxu0 %v102
    %151 = vmatprep.subr.mxu0 0.0
    %152 = vmatpush1.msra.mxu0 %v101
    %153 = vmatprep.subr.mxu0 0.0
    %154 = vmatpush1.msra.mxu0 %v100
    %155 = vmatprep.subr.mxu0 0.0
    %156 = vmatpush2.msra.mxu0 0.0
    %157 = vmatprep.subr.mxu0 0.0
    %158 = vmatpush2.msra.mxu0 0.0
    %159 = vmatprep.subr.mxu0 0.0
    %160 = vmatpush2.msra.mxu0 0.0
    %161 = vmatprep.subr.mxu0 0.0
    %162 = vmatpush2.msra.mxu0 0.0
    %163 = vmatprep.subr.mxu0 0.0
    %164 = vmatpush2.msra.mxu0 0.0
    %165 = vmatprep.subr.mxu0 0.0
    %166 = vmatpush2.msra.mxu0 0.0
    %167 = vmatprep.subr.mxu0 0.0
    %168 = vmatpush2.msra.mxu0 0.0
    %169 = vmatprep.subr.mxu0 0.0
    %170 = vmatpush2.msra.mxu0 0.0
    %171 = vmatprep.subr.mxu0 0.0
    %172 = vmatpush2.msra.mxu0 0.0
    %173 = vmatprep.subr.mxu0 0.0
    %174 = vmatpush2.msra.mxu0 0.0
    %175 = vmatprep.subr.mxu0 0.0
    %176 = vmatpush2.msra.mxu0 0.0
    %177 = vmatprep.subr.mxu0 0.0
    %178 = vmatpush2.msra.mxu0 0.0
    %179 = vmatprep.subr.mxu0 0.0
    %180 = vmatpush2.msra.mxu0 0.0
    %181 = vmatprep.subr.mxu0 0.0
    %182 = vmatpush2.msra.mxu0 0.0
    %183 = vmatprep.subr.mxu0 0.0
    %184 = vmatpush2.msra.mxu0 0.0
    %185 = vmatprep.subr.mxu0 0.0
    %186 = vmatpush2.msra.mxu0 0.0
    %187 = vmatprep.mubr.f32.mxu0 0.0
    %188 = vmatmul.mubr.f32.gmra.mxu0 %v99
    %v189 = vpop.f32.mrf.mxu0
    %v190 = vadd.f32 %v121, %v189
    %v191 = vpop.f32.mrf.mxu0
    %192 = vdwg.mxu0
    %193 = vmax.xlane.f32.xlu0 %v190
    %v194 = vpop.xlane.xlu0 %193
    %v195 = vsub.f32 %v190, %v194
    %v196 = vmul.f32 %v195, 1.442695
    %v197 = vpow.pop %v196
    %198 = vadd.xlane.f32.xlu0 %v197
    %v199 = vpop.xlane.xlu0 %198
    %v200 = vlog2.pop %v199
    %v201 = vmul.f32 %v200, 0.6931472
    %v202 = vsub.f32 %v195, %v201
    %203 = vst [vmem:[#allocation7] sm:$0xff] %v202
    // Predicated region
    $region22: #{tpu_custom_call.1} parent=1 // pred_check
      _
    $region23: #{tpu_custom_call.1} parent=1 // pred_check_branch
      %205 = sbr.rel (0) target = $region25
    $region24: #{tpu_custom_call.1} parent=1 // pred_region
      %s207 = ssub.s32 128, 128
      %208 = vsyncadd [#allocation4], %s207
      %s210 = sshll.u32 [#allocation7], 4
      %s211 = int_to_ptr.vmem [resolvable:$true] %s210
      %213 = dma.vmem_to_hbm [thread:$0]  %s211, 128, %s3, [#allocation4]
    $region25: #{tpu_custom_call.1} parent=1 // pred_fallthru
      _
    // Predicated region
    $region26: #{tpu_custom_call.1} parent=1 // pred_check
      _
    $region27: #{tpu_custom_call.1} parent=1 // pred_check_branch
      %215 = sbr.rel (0) target = $region29
    $region28: #{tpu_custom_call.1} parent=1 // pred_region
      %216 = dma.done [#allocation4], 128
    $region29: #{tpu_custom_call.1} parent=1 // pred_fallthru
      _
    %217 = vsyncpa [#allocation3], 1
    %218 = vsyncpa [#allocation6], 1
    %219 = vsyncpa [#allocation4], 1

</llo_original>
